<compile_context>
chip_gen: v5e
topology: v5e:2x2
jax: 0.10.0
libtpu: 0.0.40
codegen_flags: <defaults>
</compile_context>

<pallas_src>
import math
import numpy as np
import jax
import jax.numpy as jnp
from jax.experimental import pallas as pl
from jax.experimental.pallas import tpu as pltpu

LANE = 128


def _round_up(v, m):
    return -(-v // m) * m


# ----------------------------------------------------------------------------- kernel
def convtr_matmul_kernel(w_ref, x_ref, b_ref, o_ref):
    # w_ref: (P*Cout, K)   resident fused-phase weights (compute dtype)
    # x_ref: (K, TM)       lane-dense activation tile (pixels on lanes)
    # b_ref: (P*Cout, 1)   f32 bias (per out-channel x phase)
    # o_ref: (P*Cout, TM)  compute-dtype output tile (lane-dense, unmasked stores)
    acc = jnp.dot(w_ref[...], x_ref[...], preferred_element_type=jnp.float32)
    o_ref[...] = (acc + b_ref[...]).astype(o_ref.dtype)


# --------------------------------------------------------------------- param hoisting
def prepare_sconvtr_params(weight, bias, stride, compute_dtype=jnp.bfloat16,
                           groups=1, norm="none"):
    """One-time weight/bias re-layout (hoisted out of the per-call forward).

    weight: (Cin, Cout, kH, kW) PyTorch ConvTranspose2d layout. bias: (Cout,).
    Returns the fused-phase (Cout*P, K) weight slab in compute_dtype, the matching
    (Cout*P, 1) f32 bias, and the static geometry needed by the forward.
    """
    assert groups == 1, "TODO(synk): groups > 1 not implemented"
    assert norm == "none", "TODO(synk): weight_norm / spectral_norm not implemented"
    Cin, Cout, kH, kW = weight.shape
    sh, sw = stride
    Jh = -(-kH // sh)          # taps per phase along freq
    Jw = -(-kW // sw)          # taps per phase along time
    P = sh * sw
    K = Jh * Jw * Cin
    w_pad = jnp.pad(weight, ((0, 0), (0, 0), (0, Jh * sh - kH), (0, Jw * sw - kW)))
    w_r = w_pad.reshape(Cin, Cout, Jh, sh, Jw, sw)
    w_r = jnp.flip(w_r, axis=(2, 4))                      # tap flip (true convolution)
    # rows ordered (Cout, ph, pw) -> cheap minor-dim pixel shuffle after the kernel
    w_all = jnp.transpose(w_r, (1, 3, 5, 2, 4, 0)).reshape(Cout * P, K)
    w_all = w_all.astype(compute_dtype)
    b_all = jnp.repeat(bias.astype(jnp.float32), P).reshape(Cout * P, 1)
    return dict(w_all=w_all, b_all=b_all, Cin=Cin, Cout=Cout, kH=kH, kW=kW,
                sh=sh, sw=sw, Jh=Jh, Jw=Jw)


# ----------------------------------------------------- per-generation tile/VMEM sizing
def _select_tiling(PCout, K, M, cbytes, obytes):
    """Pick lane tile tm / grid / VMEM limit per TPU generation."""
    M_lane = _round_up(max(M, 1), LANE)
    vmem_phys = None
    try:
        info = pltpu.get_tpu_info()
        vmem_phys = getattr(info, "vmem_capacity_bytes", None)
    except Exception:
        vmem_phys = None

    if vmem_phys is not None and vmem_phys > 96 * 1024 * 1024:
        # v5e / v6e class: single TensorCore, 128 MiB physical VMEM -> big single block
        multi_tc, tm_cap = False, 2048
        vmem_limit, budget = 64 * 1024 * 1024, 56 * 1024 * 1024
    elif vmem_phys is not None:
        # v7x class: 2 TensorCores, 64 MiB physical VMEM -> even split, tighter budget
        multi_tc, tm_cap = True, 1024
        vmem_limit, budget = 48 * 1024 * 1024, 40 * 1024 * 1024
    else:
        # unknown chip: conservative settings that fit every generation
        multi_tc, tm_cap = True, 512
        vmem_limit, budget = 32 * 1024 * 1024, 24 * 1024 * 1024

    # VMEM working set: resident weights (x2 safety) + 2 x-blocks + 2 out-blocks
    w_bytes = 2 * PCout * K * cbytes
    per_tm = 2 * K * cbytes + 2 * PCout * obytes
    tm_fit = max((budget - w_bytes) // max(per_tm, 1), LANE)
    tm_cap = max(LANE, min(tm_cap, (int(tm_fit) // LANE) * LANE))

    if multi_tc:
        grid_m = max(2, pl.cdiv(M_lane, tm_cap))
        if grid_m % 2:            # even step count so both TensorCores get equal work
            grid_m += 1
    else:
        grid_m = pl.cdiv(M_lane, tm_cap)
    tm = _round_up(-(-M_lane // grid_m), LANE)
    M_pad = grid_m * tm
    return tm, grid_m, M_pad, vmem_limit


# ---------------------------------------------------------------------------- forward
def sconv_transpose2d(x, params, *, causal=False, trim_right_ratio=1.0,
                      out_padding=((0, 0), (0, 0))):
    """x: (N, Cin, H, W) NCHW. params: output of prepare_sconvtr_params."""
    w_all, b_all = params["w_all"], params["b_all"]
    Cin, Cout = params["Cin"], params["Cout"]
    kH, kW = params["kH"], params["kW"]
    sh, sw = params["sh"], params["sw"]
    Jh, Jw = params["Jh"], params["Jw"]
    compute_dtype = w_all.dtype

    N, Cin_x, H, W = x.shape
    assert Cin_x == Cin
    OH = (H - 1) * sh + kH
    OW = (W - 1) * sw + kW

    P = sh * sw
    K = Jh * Jw * Cin
    Qh = H - 1 + Jh            # per-phase output rows
    Qw = W - 1 + Jw            # per-phase output cols
    M = N * Qh * Qw            # pixel (lane) axis, batch folded in
    PCout = P * Cout

    # ---- lane-dense (K, M) activation slab, built in compute_dtype (cast BEFORE the
    #      Jh*Jw tap replication: halves wrapper HBM traffic over the replicated slab)
    xp = jnp.pad(x.astype(compute_dtype),
                 ((0, 0), (0, 0), (Jh - 1, Jh - 1), (Jw - 1, Jw - 1)))
    cols = []
    for mh in range(Jh):
        for mw in range(Jw):
            cols.append(xp[:, :, mh:mh + Qh, mw:mw + Qw])        # (N, Cin, Qh, Qw)
    x_col = jnp.stack(cols, axis=0)                              # (Jh*Jw, N, Cin, Qh, Qw)
    x_col = jnp.transpose(x_col, (0, 2, 1, 3, 4)).reshape(K, M)  # rows (mh,mw,ci)

    # ---- per-generation lane tiling over M ----
    cbytes = jnp.dtype(compute_dtype).itemsize
    tm, grid_m, M_pad, vmem_limit = _select_tiling(PCout, K, M, cbytes, cbytes)
    x_col = jnp.pad(x_col, ((0, 0), (0, M_pad - M)))

    cost = pl.CostEstimate(
        flops=2 * PCout * K * M_pad,
        transcendentals=0,
        bytes_accessed=(PCout * K * cbytes + K * M_pad * cbytes
                        + PCout * 4 + PCout * M_pad * cbytes),
    )

    y_col = pl.pallas_call(
        convtr_matmul_kernel,
        out_shape=jax.ShapeDtypeStruct((PCout, M_pad), compute_dtype),
        grid=(grid_m,),
        in_specs=[
            pl.BlockSpec((PCout, K), lambda m: (0, 0)),   # resident weights
            pl.BlockSpec((K, tm), lambda m: (0, m)),      # streamed activations
            pl.BlockSpec((PCout, 1), lambda m: (0, 0)),   # resident bias
        ],
        out_specs=pl.BlockSpec((PCout, tm), lambda m: (0, m)),
        compiler_params=pltpu.CompilerParams(
            dimension_semantics=("parallel",),
            vmem_limit_bytes=vmem_limit,
        ),
        cost_estimate=cost,
    )(w_all, x_col, b_all)

    # ---- un-flatten + interleave phases (pixel shuffle) back to NCHW ----
    y = y_col[:, :M].reshape(Cout, sh, sw, N, Qh, Qw)
    y = jnp.transpose(y, (3, 0, 4, 1, 5, 2)).reshape(N, Cout, Qh * sh, Qw * sw)
    y = y[:, :, :OH, :OW]

    # ---- SConvTranspose2d unpadding (freq = H axis, time = W axis) ----
    padding_freq_total = kH - sh
    padding_time_total = kW - sw
    (f_op_l, f_op_r), (t_op_l, t_op_r) = out_padding
    pfr = padding_freq_total // 2
    pfl = padding_freq_total - pfr
    if causal:
        ptr = math.ceil(padding_time_total * trim_right_ratio)
        ptl = padding_time_total - ptr
    else:
        ptr = padding_time_total // 2
        ptl = padding_time_total - ptr
    pfl = max(pfl - f_op_l, 0)
    pfr = max(pfr - f_op_r, 0)
    ptl = max(ptl - t_op_l, 0)
    ptr = max(ptr - t_op_r, 0)
    return y[..., pfl:y.shape[-2] - pfr, ptl:y.shape[-1] - ptr]


# -------------------------------------------------------------------------- reference
def ref_forward(x, weight, bias, stride, causal=False, trim_right_ratio=1.0,
                out_padding=((0, 0), (0, 0))):
    """Pure numpy reference of ConvTranspose2d + SConvTranspose2d unpad."""
    x = np.asarray(x, np.float32)
    weight = np.asarray(weight, np.float32)
    bias = np.asarray(bias, np.float32)
    N, Cin, H, W = x.shape
    _, Cout, kH, kW = weight.shape
    sh, sw = stride
    OH = (H - 1) * sh + kH
    OW = (W - 1) * sw + kW
    y = np.zeros((N, Cout, OH, OW), np.float32)
    for n in range(N):
        for ci in range(Cin):
            for ih in range(H):
                for iw in range(W):
                    y[n, :, ih * sh:ih * sh + kH, iw * sw:iw * sw + kW] += (
                        x[n, ci, ih, iw] * weight[ci]
                    )
    y += bias[None, :, None, None]
    pf = kH - sh
    pt = kW - sw
    pfr = pf // 2
    pfl = pf - pfr
    if causal:
        ptr = math.ceil(pt * trim_right_ratio)
        ptl = pt - ptr
    else:
        ptr = pt // 2
        ptl = pt - ptr
    (f_op_l, f_op_r), (t_op_l, t_op_r) = out_padding
    pfl = max(pfl - f_op_l, 0)
    pfr = max(pfr - f_op_r, 0)
    ptl = max(ptl - t_op_l, 0)
    ptr = max(ptr - t_op_r, 0)
    return y[:, :, pfl:OH - pfr, ptl:OW - ptr]


if __name__ == "__main__":
    key = jax.random.PRNGKey(0)

    def make_case(k, N, Cin, Cout, H, W, kH, kW):
        k1, k2, k3 = jax.random.split(k, 3)
        fan = Cin * kH * kW
        bound = 1.0 / math.sqrt(fan)
        weight = jax.random.uniform(k1, (Cin, Cout, kH, kW), jnp.float32, -bound, bound)
        bias = jax.random.uniform(k2, (Cout,), jnp.float32, -bound, bound)
        x = jax.random.normal(k3, (N, Cin, H, W), jnp.float32)
        return x, weight, bias

    # --- case 1: SConvTranspose2d(4, 8, (4,4), stride=(2,2), causal=False) ---
    N, Cin, Cout, H, W, kH, kW = 2, 4, 8, 16, 16, 4, 4
    stride = (2, 2)
    k_case, key = jax.random.split(key)
    x, weight, bias = make_case(k_case, N, Cin, Cout, H, W, kH, kW)
    y_ref = ref_forward(x, weight, bias, stride)

    # strict algorithmic check (f32 operands / f32 output)
    p32 = prepare_sconvtr_params(weight, bias, stride, compute_dtype=jnp.float32)
    y32 = jax.block_until_ready(sconv_transpose2d(x, p32))
    assert y32.shape == y_ref.shape == (N, Cout, H * stride[0], W * stride[1])
    np.testing.assert_allclose(np.asarray(y32), y_ref, rtol=1e-4, atol=1e-4)

    # fast path: bf16 operands + bf16 output with f32 accumulation (default)
    pbf = prepare_sconvtr_params(weight, bias, stride)      # prepared once, reused
    ybf = jax.block_until_ready(sconv_transpose2d(x, pbf))
    assert ybf.shape == y_ref.shape
    np.testing.assert_allclose(np.asarray(ybf, dtype=np.float32), y_ref,
                               rtol=5e-2, atol=2e-2)
    ybf2 = jax.block_until_ready(sconv_transpose2d(x, pbf))   # weight prep hoisted
    np.testing.assert_allclose(np.asarray(ybf2, np.float32),
                               np.asarray(ybf, np.float32), rtol=0, atol=0)

    # --- case 2: kernel not divisible by stride, (5,3) with stride (2,1) ---
    stride2 = (2, 1)
    k_case, key = jax.random.split(key)
    x2, w2, b2 = make_case(k_case, 2, 3, 5, 8, 8, 5, 3)
    y2_ref = ref_forward(x2, w2, b2, stride2)
    p2 = prepare_sconvtr_params(w2, b2, stride2, compute_dtype=jnp.float32)
    y2 = jax.block_until_ready(sconv_transpose2d(x2, p2))
    assert y2.shape == y2_ref.shape, (y2.shape, y2_ref.shape)
    np.testing.assert_allclose(np.asarray(y2), y2_ref, rtol=1e-4, atol=1e-4)

    # --- case 3: causal trim + out_padding on the time axis ---
    stride3 = (2, 2)
    out_pad3 = ((0, 0), (1, 0))          # (freq (l,r), time (l,r))
    k_case, key = jax.random.split(key)
    x3, w3, b3 = make_case(k_case, 1, 4, 6, 8, 8, 4, 4)
    y3_ref = ref_forward(x3, w3, b3, stride3, causal=True, trim_right_ratio=1.0,
                         out_padding=out_pad3)
    p3 = prepare_sconvtr_params(w3, b3, stride3, compute_dtype=jnp.float32)
    y3 = jax.block_until_ready(
        sconv_transpose2d(x3, p3, causal=True, trim_right_ratio=1.0,
                          out_padding=out_pad3))
    assert y3.shape == y3_ref.shape, (y3.shape, y3_ref.shape)
    np.testing.assert_allclose(np.asarray(y3), y3_ref, rtol=1e-4, atol=1e-4)

    print("KERNEL_OK")
</pallas_src>

<mosaic_0001>
module attributes {stable_mosaic.version = 11 : i64} {
  func.func @convtr_matmul_kernel(%arg0: i32, %arg1: memref<32x16xf32, #tpu.memory_space<vmem>>, %arg2: memref<16x384xf32, #tpu.memory_space<vmem>>, %arg3: memref<32x1xf32, #tpu.memory_space<vmem>>, %arg4: memref<32x384xf32, #tpu.memory_space<vmem>>) attributes {dimension_semantics = [#tpu.dimension_semantics<parallel>], iteration_bounds = array<i64: 2>, scalar_prefetch = 0 : i64, scratch_operands = 0 : i64, tpu.core_type = #tpu.core_type<tc>, window_params = [{pipeline_mode = #tpu.pipeline_mode<synchronous>, transform_indices = @transform_0, window_bounds = array<i64: 32, 16>}, {transform_indices = @transform_1, window_bounds = array<i64: 16, 384>}, {pipeline_mode = #tpu.pipeline_mode<synchronous>, transform_indices = @transform_2, window_bounds = array<i64: 32, 1>}, {transform_indices = @transform_3, window_bounds = array<i64: 32, 384>}]} {
    %c0 = arith.constant 0 : index
    %c0_0 = arith.constant 0 : index
    %0 = vector.load %arg1[%c0, %c0_0] : memref<32x16xf32, #tpu.memory_space<vmem>>, vector<32x16xf32>
    %c0_1 = arith.constant 0 : index
    %c0_2 = arith.constant 0 : index
    %1 = vector.load %arg2[%c0_1, %c0_2] : memref<16x384xf32, #tpu.memory_space<vmem>>, vector<16x384xf32>
    %cst = arith.constant dense<0.000000e+00> : vector<32x384xf32>
    %2 = tpu.matmul %0, %1, %cst {dimension_numbers = #tpu.dot_dimension_numbers<[1], [0], [0], [1], [0, 0, 1, 1], [], []>} : vector<32x16xf32>, vector<16x384xf32>, vector<32x384xf32> -> vector<32x384xf32>
    %c0_3 = arith.constant 0 : index
    %c0_4 = arith.constant 0 : index
    %3 = vector.load %arg3[%c0_3, %c0_4] : memref<32x1xf32, #tpu.memory_space<vmem>>, vector<32x1xf32>
    %4 = vector.broadcast %3 : vector<32x1xf32> to vector<32x384xf32>
    %5 = arith.addf %2, %4 : vector<32x384xf32>
    %c0_5 = arith.constant 0 : index
    %c0_6 = arith.constant 0 : index
    %6 = vector.load %arg4[%c0_5, %c0_6] : memref<32x384xf32, #tpu.memory_space<vmem>>, vector<32x384xf32>
    tpu.vector_store %arg4[%c0_5, %c0_6], %5 {strides = array<i32>} : memref<32x384xf32, #tpu.memory_space<vmem>>, vector<32x384xf32>,
    return
  }
  func.func @transform_0(%arg0: i32) -> (i32, i32) {
    %c0_i32 = arith.constant 0 : i32
    %c0_i32_0 = arith.constant 0 : i32
    %c0_i32_1 = arith.constant 0 : i32
    return %c0_i32, %c0_i32_0 : i32, i32
  }
  func.func @transform_1(%arg0: i32) -> (i32, i32) {
    %c0_i32 = arith.constant 0 : i32
    %c0_i32_0 = arith.constant 0 : i32
    return %c0_i32, %arg0 : i32, i32
  }
  func.func @transform_2(%arg0: i32) -> (i32, i32) {
    %c0_i32 = arith.constant 0 : i32
    %c0_i32_0 = arith.constant 0 : i32
    %c0_i32_1 = arith.constant 0 : i32
    return %c0_i32, %c0_i32_0 : i32, i32
  }
  func.func @transform_3(%arg0: i32) -> (i32, i32) {
    %c0_i32 = arith.constant 0 : i32
    %c0_i32_0 = arith.constant 0 : i32
    return %c0_i32, %arg0 : i32, i32
  }
}

</mosaic_0001>

<llo_original>
// kernel: tpu_custom_call.1
$region0: #{tpu_custom_call.1}
  #allocation0 [shape = 'u32[]', space=smem, size = 0x4, offset = 0x4, fixed_abs, tag = 'smem constant byte address 0x4 - core index']
  #allocation1 [shape = 'u32[72,128]{1,0:T(1,128)}', space=vmem, size = 0x9000, scoped, tag = 'internal scratch']
  %s0 = inlined_call_operand.vmem [shape: f32[32,16], index: 0, kind: input, shape index: {}]
  %s1 = inlined_call_operand.hbm [shape: f32[16,768], index: 1, kind: input, shape index: {}]
  %s2 = inlined_call_operand.vmem [shape: f32[32,1], index: 2, kind: input, shape index: {}]
  %s3 = inlined_call_operand.hbm [shape: f32[32,768], index: 3, kind: output, shape index: {}]
  %s4 = sld [smem:[#allocation0]]
  $region49: #{tpu_custom_call.1} parent=0
    _
  %s6 = ssub.s32 1, %s4
  %s7 = scalar_select 0, %s6, %s4
  $region1: #{tpu_custom_call.1} parent=0
    #allocation2 [shape = 'u8[49152]{0}', space=vmem, size = 0xc000, scoped, tag = 'input window, operand 1']
    #allocation3 [shape = 's32[2]{0}', space=sflag, size = 0x8, scoped, tag = 'scoped memory for tpu_custom_call.1']
    #allocation4 [shape = 's32[2]{0}', space=sflag, size = 0x8, scoped, tag = 'scoped memory for tpu_custom_call.1']
    #allocation5 [shape = 'u8[98304]{0}', space=vmem, size = 0x18000, scoped, tag = 'output window, operand 0']
    %8 = vsyncpa [#allocation3], 0
    %s9 = scalar_lea.sflag [#allocation3], 1
    %10 = vsyncpa %s9, 0
    %11 = vsyncpa [#allocation4], 0
    %s12 = scalar_lea.sflag [#allocation4], 1
    %13 = vsyncpa %s12, 0
    loop: start=0, step=1, limit=4
    $region2: #{tpu_custom_call.1} parent=1 // loop_pre_header
      _
    $region3: #{tpu_custom_call.1} parent=1 // loop_header
      %s15 = sphi 0, %s19
      %p16 = scmp.ge.s32.totalorder %s15, 4
      %s23 = sphi 0, %s23
      %s25 = sphi 0, %s23
      %s26 = sphi 0, %s25
      %s40 = sphi 0, %s26
      %s46 = sphi 0, %s48
      %s49 = sphi 0, %s46
      %s50 = sphi 0, %s49
      %s66 = sphi 0, %s50
      %s70 = sphi 0, %s70
      %s72 = sphi 0, %s70
      %s73 = sphi 0, %s72
      %s87 = sphi 0, %s73
      %s93 = sphi 0, %s95
      %s96 = sphi 0, %s93
      %s97 = sphi 0, %s96
      %s113 = sphi 0, %s97
    $region4: #{tpu_custom_call.1} parent=1 // loop_header_branch
      %18 = sbr.rel (%p16) target = $region8
    $region5: #{tpu_custom_call.1} parent=1 // loop_body
      %s20 = ssub.s32 %s15, 1
      %s21 = ssub.s32 %s15, 2
      %s22 = sadd.s32 %s15, 1
      %s24 = sadd.s32 %s23, 1
      %p27 = scmp.eq.s32.totalorder %s15, 1
      %p28 = scmp.ne.s32.totalorder %s23, %s25
      %p29 = scmp.eq.s32.totalorder %s15, 0
      %p30 = por %p28, %p29
      %p31 = scmp.ne.s32.totalorder %s23, %s25
      %p32 = scmp.eq.s32.totalorder %s20, 1
      %p33 = por %p31, %p32
      %p34 = scmp.ne.s32.totalorder %s25, %s26
      %p35 = scmp.eq.s32.totalorder %s20, 0
      %p36 = por %p34, %p35
      %p37 = scmp.ne.s32.totalorder %s25, %s26
      %p38 = scmp.eq.s32.totalorder %s21, 1
      %p39 = por %p37, %p38
      %p41 = scmp.ne.s32.totalorder %s26, %s40
      %p42 = scmp.eq.s32.totalorder %s21, 0
      %p43 = por %p41, %p42
      %s44 = ssub.s32 %s15, %s22
      %p45 = scmp.eq.s32.totalorder %s44, 0
      %s47 = sadd.s32 %s46, 1
      %s48 = scalar_select %p45, %s46, %s47
      %p51 = pneg %p45
      %p52 = scmp.eq.s32.totalorder %s15, 1
      %p53 = por %p51, %p52
      %p54 = scmp.ne.s32.totalorder %s46, %s49
      %p55 = scmp.eq.s32.totalorder %s15, 0
      %p56 = por %p54, %p55
      %p57 = scmp.ne.s32.totalorder %s46, %s49
      %p58 = scmp.eq.s32.totalorder %s20, 1
      %p59 = por %p57, %p58
      %p60 = scmp.ne.s32.totalorder %s49, %s50
      %p61 = scmp.eq.s32.totalorder %s20, 0
      %p62 = por %p60, %p61
      %p63 = scmp.ne.s32.totalorder %s49, %s50
      %p64 = scmp.eq.s32.totalorder %s21, 1
      %p65 = por %p63, %p64
      %p67 = scmp.ne.s32.totalorder %s50, %s66
      %p68 = scmp.eq.s32.totalorder %s21, 0
      %p69 = por %p67, %p68
      %s71 = sadd.s32 %s70, 1
      %p74 = scmp.eq.s32.totalorder %s15, 1
      %p75 = scmp.ne.s32.totalorder %s70, %s72
      %p76 = scmp.eq.s32.totalorder %s15, 0
      %p77 = por %p75, %p76
      %p78 = scmp.ne.s32.totalorder %s70, %s72
      %p79 = scmp.eq.s32.totalorder %s20, 1
      %p80 = por %p78, %p79
      %p81 = scmp.ne.s32.totalorder %s72, %s73
      %p82 = scmp.eq.s32.totalorder %s20, 0
      %p83 = por %p81, %p82
      %p84 = scmp.ne.s32.totalorder %s72, %s73
      %p85 = scmp.eq.s32.totalorder %s21, 1
      %p86 = por %p84, %p85
      %p88 = scmp.ne.s32.totalorder %s73, %s87
      %p89 = scmp.eq.s32.totalorder %s21, 0
      %p90 = por %p88, %p89
      %s91 = ssub.s32 %s15, %s22
      %p92 = scmp.eq.s32.totalorder %s91, 0
      %s94 = sadd.s32 %s93, 1
      %s95 = scalar_select %p92, %s93, %s94
      %p98 = pneg %p92
      %p99 = scmp.eq.s32.totalorder %s15, 1
      %p100 = por %p98, %p99
      %p101 = scmp.ne.s32.totalorder %s93, %s96
      %p102 = scmp.eq.s32.totalorder %s15, 0
      %p103 = por %p101, %p102
      %p104 = scmp.ne.s32.totalorder %s93, %s96
      %p105 = scmp.eq.s32.totalorder %s20, 1
      %p106 = por %p104, %p105
      %p107 = scmp.ne.s32.totalorder %s96, %s97
      %p108 = scmp.eq.s32.totalorder %s20, 0
      %p109 = por %p107, %p108
      %p110 = scmp.ne.s32.totalorder %s96, %s97
      %p111 = scmp.eq.s32.totalorder %s21, 1
      %p112 = por %p110, %p111
      %p114 = scmp.ne.s32.totalorder %s97, %s113
      %p115 = scmp.eq.s32.totalorder %s21, 0
      %p116 = por %p114, %p115
      %p117 = scmp.le.s32.totalorder 1, %s15
      %p118 = scmp.lt.s32.totalorder %s15, 3
      %p119 = pnand %p117, %p118
      %p120 = pneg %p119
      // Predicated region
      $region9: #{tpu_custom_call.1} parent=5 // pred_check
        _
      $region10: #{tpu_custom_call.1} parent=5 // pred_check_branch
        %122 = sbr.rel (%p119) target = $region12
      $region11: #{tpu_custom_call.1} parent=5 // pred_region
        %s123 = ssub.s32 %s15, 1
        // Predicated region
        $region13: #{tpu_custom_call.1} parent=11 // pred_check
          %p124 = pneg %p36
        $region14: #{tpu_custom_call.1} parent=11 // pred_check_branch
          %126 = sbr.rel (%p124) target = $region16
        $region15: #{tpu_custom_call.1} parent=11 // pred_region
          _
        $region16: #{tpu_custom_call.1} parent=11 // pred_fallthru
          _
        // Predicated region
        $region17: #{tpu_custom_call.1} parent=11 // pred_check
          %p127 = pneg %p83
        $region18: #{tpu_custom_call.1} parent=11 // pred_check_branch
          %129 = sbr.rel (%p127) target = $region20
        $region19: #{tpu_custom_call.1} parent=11 // pred_region
          _
        $region20: #{tpu_custom_call.1} parent=11 // pred_fallthru
          _
      $region12: #{tpu_custom_call.1} parent=5 // pred_fallthru
        _
      %p130 = scmp.lt.s32.totalorder %s15, 2
      // Predicated region
      $region21: #{tpu_custom_call.1} parent=5 // pred_check
        %p131 = pneg %p130
      $region22: #{tpu_custom_call.1} parent=5 // pred_check_branch
        %133 = sbr.rel (%p131) target = $region24
      $region23: #{tpu_custom_call.1} parent=5 // pred_region
        // Predicated region
        $region25: #{tpu_custom_call.1} parent=23 // pred_check
          %p134 = pneg %p56
        $region26: #{tpu_custom_call.1} parent=23 // pred_check_branch
          %136 = sbr.rel (%p134) target = $region28
        $region27: #{tpu_custom_call.1} parent=23 // pred_region
          %s137 = sand.u32 %s46, 1
          %s138 = scalar_lea.sflag [#allocation3], %s137
          %s139 = sand.u32 %s46, 1
          %s140 = smul.addr %s139, 48
          %s141 = scalar_lea.vmem [#allocation2], %s140
          %s142 = smul.u32 3, %s15
          %144 = vsyncadd %s138, 0
          %s145 = smul.addr %s142, 8
          %s146 = scalar_lea.hbm %s1, %s145
          %s147 = sshll.u32 %s146, 4
          %s148 = int_to_ptr.hbm [resolvable:$true] %s147
          %s149 = sshll.u32 %s141, 4
          %s150 = int_to_ptr.vmem [resolvable:$true] %s149
          %155 = dma.hbm_to_vmem [thread:$0]  %s148, 768, %s150, %s138, 768, 384, 24
        $region28: #{tpu_custom_call.1} parent=23 // pred_fallthru
          _
      $region24: #{tpu_custom_call.1} parent=5 // pred_fallthru
        _
      %p156 = scmp.le.s32.totalorder 1, %s15
      %p157 = scmp.lt.s32.totalorder %s15, 3
      %p158 = pnand %p156, %p157
      %p159 = pneg %p158
      // Predicated region
      $region29: #{tpu_custom_call.1} parent=5 // pred_check
        _
      $region30: #{tpu_custom_call.1} parent=5 // pred_check_branch
        %161 = sbr.rel (%p158) target = $region32
      $region31: #{tpu_custom_call.1} parent=5 // pred_region
        %s162 = ssub.s32 %s15, 1
        %s163 = sand.u32 %s49, 1
        %s164 = scalar_lea.sflag [#allocation3], %s163
        %s165 = sand.u32 %s49, 1
        %s166 = smul.addr %s165, 48
        %s167 = scalar_lea.vmem [#allocation2], %s166
        // Predicated region
        $region33: #{tpu_custom_call.1} parent=31 // pred_check
          %p168 = pneg %p62
        $region34: #{tpu_custom_call.1} parent=31 // pred_check_branch
          %170 = sbr.rel (%p168) target = $region36
        $region35: #{tpu_custom_call.1} parent=31 // pred_region
          %172 = dma.done %s164, 768
        $region36: #{tpu_custom_call.1} parent=31 // pred_fallthru
          _
        %p173 = pneg %p36
        %p174 = pneg %p33
        %s175 = sand.u32 %s49, 1
        %s176 = scalar_lea.sflag [#allocation3], %s175
        %s177 = sand.u32 %s49, 1
        %s178 = smul.addr %s177, 48
        %s179 = scalar_lea.vmem [#allocation2], %s178
        %p180 = pneg %p62
        %p181 = pneg %p59
        %p182 = pneg %p83
        %p183 = pneg %p80
        %p184 = pneg %p109
        %p185 = pneg %p106
        %s186 = sand.u32 %s96, 1
        %s187 = scalar_lea.sflag [#allocation4], %s186
        %s188 = sand.u32 %s96, 1
        %s189 = smul.addr %s188, 96
        %s190 = scalar_lea.vmem [#allocation5], %s189
        %s191 = smul.u32 3, %s20
        %s192 = smul.u32 3, %s20
        %v193 = vld [vmem:[%s0] sm:$0xff]
        %v194 = vld [vmem:[%s0 + $0x8] sm:$0xff]
        %v195 = vld [vmem:[%s0 + $0x10] sm:$0xff]
        %v196 = vld [vmem:[%s0 + $0x18] sm:$0xff]
        %v197 = vld [vmem:[%s167] sm:$0xff]
        %v198 = vld [vmem:[%s167 + $0x8] sm:$0xff]
        %v199 = vld [vmem:[%s167 + $0x10] sm:$0xff]
        %v200 = vld [vmem:[%s167 + $0x18] sm:$0xff]
        %v201 = vld [vmem:[%s167 + $0x20] sm:$0xff]
        %v202 = vld [vmem:[%s167 + $0x28] sm:$0xff]
        %v203 = vld [vmem:[%s2] sm:$0xff]
        %v204 = vld [vmem:[%s2 + $0x8] sm:$0xff]
        %v205 = vld [vmem:[%s2 + $0x10] sm:$0xff]
        %v206 = vld [vmem:[%s2 + $0x18] sm:$0xff]
        %208 = vset.pattern.permute.xlu0 0
        %209 = vperm.xlu0 %208, %v203
        %v210 = vpop.permute.xlu0 %209
        %213 = vset.pattern.permute.xlu0 0
        %214 = vperm.xlu0 %213, %v204
        %v215 = vpop.permute.xlu0 %214
        %218 = vset.pattern.permute.xlu0 0
        %219 = vperm.xlu0 %218, %v205
        %v220 = vpop.permute.xlu0 %219
        %223 = vset.pattern.permute.xlu0 0
        %224 = vperm.xlu0 %223, %v206
        %v225 = vpop.permute.xlu0 %224
        %vm227 = vcmask 130048
        %v229 = vsel %vm227, %v193, 0
        %v232 = vsel %vm227, %v194, 0
        %v235 = vsel %vm227, %v195, 0
        %v238 = vsel %vm227, %v196, 0
        %240 = vmatpush.msra.mxu0 0.0
        %241 = vmatpush.msra.mxu0 0.0
        %242 = vmatpush.msra.mxu0 0.0
        %243 = vmatpush.msra.mxu0 0.0
        %244 = vmatpush.msra.mxu0 0.0
        %245 = vmatpush.msra.mxu0 0.0
        %246 = vmatpush.msra.mxu0 0.0
        %247 = vmatpush.msra.mxu0 0.0
        %248 = vmatpush.msra.mxu0 0.0
        %249 = vmatpush.msra.mxu0 0.0
        %250 = vmatpush.msra.mxu0 0.0
        %251 = vmatpush.msra.mxu0 0.0
        %252 = vmatpush.msra.mxu0 0.0
        %253 = vmatpush.msra.mxu0 0.0
        %254 = vmatpush.msra.mxu0 %v200
        %255 = vmatpush.msra.mxu0 %v197
        %256 = vmatmul.f32.gmra.mxu0 %v229
        %v257 = vpop.f32.mrf.mxu0
        %v258 = vadd.f32 %v210, %v257
        %259 = vmatmul.f32.gmra.mxu0 %v232
        %v260 = vpop.f32.mrf.mxu0
        %v261 = vadd.f32 %v215, %v260
        %262 = vmatmul.f32.gmra.mxu0 %v235
        %v263 = vpop.f32.mrf.mxu0
        %v264 = vadd.f32 %v220, %v263
        %265 = vmatmul.f32.gmra.mxu0 %v238
        %v266 = vpop.f32.mrf.mxu0
        %v267 = vadd.f32 %v225, %v266
        %268 = vdwg.mxu0
        %269 = vmatpush.msra.mxu0 0.0
        %270 = vmatpush.msra.mxu0 0.0
        %271 = vmatpush.msra.mxu0 0.0
        %272 = vmatpush.msra.mxu0 0.0
        %273 = vmatpush.msra.mxu0 0.0
        %274 = vmatpush.msra.mxu0 0.0
        %275 = vmatpush.msra.mxu0 0.0
        %276 = vmatpush.msra.mxu0 0.0
        %277 = vmatpush.msra.mxu0 0.0
        %278 = vmatpush.msra.mxu0 0.0
        %279 = vmatpush.msra.mxu0 0.0
        %280 = vmatpush.msra.mxu0 0.0
        %281 = vmatpush.msra.mxu0 0.0
        %282 = vmatpush.msra.mxu0 0.0
        %283 = vmatpush.msra.mxu0 %v201
        %284 = vmatpush.msra.mxu0 %v198
        %285 = vmatmul.f32.gmra.mxu0 %v229
        %v286 = vpop.f32.mrf.mxu0
        %v287 = vadd.f32 %v210, %v286
        %288 = vmatmul.f32.gmra.mxu0 %v232
        %v289 = vpop.f32.mrf.mxu0
        %v290 = vadd.f32 %v215, %v289
        %291 = vmatmul.f32.gmra.mxu0 %v235
        %v292 = vpop.f32.mrf.mxu0
        %v293 = vadd.f32 %v220, %v292
        %294 = vmatmul.f32.gmra.mxu0 %v238
        %v295 = vpop.f32.mrf.mxu0
        %v296 = vadd.f32 %v225, %v295
        %297 = vdwg.mxu0
        %298 = vmatpush.msra.mxu0 0.0
        %299 = vmatpush.msra.mxu0 0.0
        %300 = vmatpush.msra.mxu0 0.0
        %301 = vmatpush.msra.mxu0 0.0
        %302 = vmatpush.msra.mxu0 0.0
        %303 = vmatpush.msra.mxu0 0.0
        %304 = vmatpush.msra.mxu0 0.0
        %305 = vmatpush.msra.mxu0 0.0
        %306 = vmatpush.msra.mxu0 0.0
        %307 = vmatpush.msra.mxu0 0.0
        %308 = vmatpush.msra.mxu0 0.0
        %309 = vmatpush.msra.mxu0 0.0
        %310 = vmatpush.msra.mxu0 0.0
        %311 = vmatpush.msra.mxu0 0.0
        %312 = vmatpush.msra.mxu0 %v202
        %313 = vmatpush.msra.mxu0 %v199
        %314 = vmatmul.f32.gmra.mxu0 %v229
        %v315 = vpop.f32.mrf.mxu0
        %v316 = vadd.f32 %v210, %v315
        %317 = vmatmul.f32.gmra.mxu0 %v232
        %v318 = vpop.f32.mrf.mxu0
        %v319 = vadd.f32 %v215, %v318
        %320 = vmatmul.f32.gmra.mxu0 %v235
        %v321 = vpop.f32.mrf.mxu0
        %v322 = vadd.f32 %v220, %v321
        %323 = vmatmul.f32.gmra.mxu0 %v238
        %v324 = vpop.f32.mrf.mxu0
        %v325 = vadd.f32 %v225, %v324
        %326 = vdwg.mxu0
        %327 = vst [vmem:[%s190] sm:$0xff] %v258
        %328 = vst [vmem:[%s190 + $0x8] sm:$0xff] %v287
        %329 = vst [vmem:[%s190 + $0x10] sm:$0xff] %v316
        %330 = vst [vmem:[%s190 + $0x18] sm:$0xff] %v261
        %331 = vst [vmem:[%s190 + $0x20] sm:$0xff] %v290
        %332 = vst [vmem:[%s190 + $0x28] sm:$0xff] %v319
        %333 = vst [vmem:[%s190 + $0x30] sm:$0xff] %v264
        %334 = vst [vmem:[%s190 + $0x38] sm:$0xff] %v293
        %335 = vst [vmem:[%s190 + $0x40] sm:$0xff] %v322
        %336 = vst [vmem:[%s190 + $0x48] sm:$0xff] %v267
        %337 = vst [vmem:[%s190 + $0x50] sm:$0xff] %v296
        %338 = vst [vmem:[%s190 + $0x58] sm:$0xff] %v325
        %s339 = sand.u32 %s96, 1
        %s340 = scalar_lea.sflag [#allocation4], %s339
        %s341 = sand.u32 %s96, 1
        %s342 = smul.addr %s341, 96
        %s343 = scalar_lea.vmem [#allocation5], %s342
        // Predicated region
        $region37: #{tpu_custom_call.1} parent=31 // pred_check
          %p344 = pneg %p106
        $region38: #{tpu_custom_call.1} parent=31 // pred_check_branch
          %346 = sbr.rel (%p344) target = $region40
        $region39: #{tpu_custom_call.1} parent=31 // pred_region
          %s347 = smul.u32 3, %s20
          %349 = vsyncadd %s340, 0
          %s350 = smul.addr %s347, 8
          %s351 = scalar_lea.hbm %s3, %s350
          %s352 = sshll.u32 %s343, 4
          %s353 = int_to_ptr.vmem [resolvable:$true] %s352
          %s354 = sshll.u32 %s351, 4
          %s355 = int_to_ptr.hbm [resolvable:$true] %s354
          %360 = dma.vmem_to_hbm [thread:$0]  %s353, 1536, %s355, %s340, 384, 768, 24
        $region40: #{tpu_custom_call.1} parent=31 // pred_fallthru
          _
      $region32: #{tpu_custom_call.1} parent=5 // pred_fallthru
        _
      %p361 = scmp.le.s32.totalorder 2, %s15
      // Predicated region
      $region41: #{tpu_custom_call.1} parent=5 // pred_check
        %p362 = pneg %p361
      $region42: #{tpu_custom_call.1} parent=5 // pred_check_branch
        %364 = sbr.rel (%p362) target = $region44
      $region43: #{tpu_custom_call.1} parent=5 // pred_region
        %s365 = ssub.s32 %s15, 2
        // Predicated region
        $region45: #{tpu_custom_call.1} parent=43 // pred_check
          %p366 = pneg %p112
        $region46: #{tpu_custom_call.1} parent=43 // pred_check_branch
          %368 = sbr.rel (%p366) target = $region48
        $region47: #{tpu_custom_call.1} parent=43 // pred_region
          %s369 = sand.u32 %s97, 1
          %s370 = scalar_lea.sflag [#allocation4], %s369
          %s371 = sand.u32 %s97, 1
          %s372 = smul.addr %s371, 96
          %s373 = scalar_lea.vmem [#allocation5], %s372
          %375 = dma.done %s370, 1536
        $region48: #{tpu_custom_call.1} parent=43 // pred_fallthru
          _
      $region44: #{tpu_custom_call.1} parent=5 // pred_fallthru
        _
    $region6: #{tpu_custom_call.1} parent=1 // loop_footer
      %s19 = sadd.s32 1, %s15
    $region7: #{tpu_custom_call.1} parent=1 // loop_footer_branch
      %14 = sbr.rel target = $region3
    $region8: #{tpu_custom_call.1} parent=1 // loop_exit
      _
    %376 = vsyncpa [#allocation3], 1
    %s377 = scalar_lea.sflag [#allocation3], 1
    %378 = vsyncpa %s377, 1
    %379 = vsyncpa [#allocation4], 1
    %s380 = scalar_lea.sflag [#allocation4], 1
    %381 = vsyncpa %s380, 1

</llo_original>
